<compile_context>
chip_gen: v7x
topology: tpu7x:2x2x1
jax: 0.10.0
libtpu: 0.0.40
codegen_flags: <defaults>
</compile_context>

<pallas_src>
import functools

import jax
import jax.numpy as jnp
from jax.experimental import pallas as pl
from jax.experimental.pallas import tpu as pltpu

LEAKY_ALPHA = 0.2            # `alpha` arg of the module (LeakyReLU slope)
NEG_BIG = -9e15              # -9000000000000000.0 used for masked logits
APPROX_SOFTMAX_RECIP = True  # EUP approx reciprocal in softmax denominator
                             # (inference-grade; set False for exact division)


def _gat_kernel(h_ref, wext_ref, adj_ref, out_ref, wh_ref, f1_ref, f2_ref):
    # h_ref:    (TB, Np, F_in)       TB graphs of this batch block (node-padded)
    # wext_ref: (F_in, F_out + 2)    [W | W @ a[:F_out] | W @ a[F_out:]]
    # adj_ref:  (TB, TQ, Np)         adjacency rows of the current query tile
    # out_ref:  (TB, TQ, F_out)  or lane-dense (TB, TQ * F_out)
    # scratch:  wh_ref (TB,Np,F_out), f1_ref (TB,Np,1) f32, f2_ref (TB,1,Np) f32
    q = pl.program_id(1)
    TB, Np, F_in = h_ref.shape
    F_out = wh_ref.shape[2]
    TQ = adj_ref.shape[1]

    # ---- Once per graph block (q == 0): fused projection + attention terms.
    # The thin (F_out, 2) attention-vector product is folded into the main
    # matmul, so one MXU dispatch yields Wh and the f1/f2 terms.
    @pl.when(q == 0)
    def _():
        h2 = h_ref[...].reshape(TB * Np, F_in)                    # fill MXU rows
        whf = jnp.dot(h2, wext_ref[...],
                      preferred_element_type=jnp.float32)         # (TB*Np, F_out+2)
        wh_ref[...] = whf[:, :F_out].reshape(TB, Np, F_out).astype(wh_ref.dtype)
        f = whf[:, F_out:].reshape(TB, Np, 2)
        f1_ref[...] = f[:, :, 0:1]                                # (TB, Np, 1)
        f2_ref[...] = jnp.swapaxes(f[:, :, 1:2], 1, 2)            # (TB, 1, Np)

    # ---- Per query tile: LeakyReLU logits, masked softmax, aggregation.
    qs = pl.multiple_of(q * TQ, TQ)
    e = f1_ref[:, pl.ds(qs, TQ), :] + f2_ref[...]                 # (TB, TQ, Np)
    e = jnp.maximum(e, LEAKY_ALPHA * e)                           # LeakyReLU
    logits = jnp.where(adj_ref[...] > 0, e, NEG_BIG)              # padded cols: adj==0
    logits = logits - jnp.max(logits, axis=-1, keepdims=True)
    p = jnp.exp(logits)
    denom = jnp.sum(p, axis=-1, keepdims=True)
    if APPROX_SOFTMAX_RECIP:
        att = p * pl.reciprocal(denom, approx=True)
    else:
        att = p / denom
    # TODO(synk): F.dropout on `att` is identity in eval mode; training-mode
    # dropout (pltpu stateful PRNG mask) is not implemented here.

    cdt = wh_ref.dtype
    h_prime = jnp.einsum('bqn,bng->bqg', att.astype(cdt), wh_ref[...],
                         preferred_element_type=jnp.float32)      # (TB, TQ, F_out)
    out = jnp.where(h_prime > 0,
                    h_prime,
                    jnp.exp(jnp.minimum(h_prime, 0.0)) - 1.0)     # ELU(alpha=1)
    out = out.astype(out_ref.dtype)
    if len(out_ref.shape) == 2:                  # lane-dense flattened store
        out_ref[...] = out.reshape(TB, TQ * F_out)
    else:
        out_ref[...] = out


# ----------------------------------------------------------------------------
# Tile / VMEM planning (generation-aware).
# ----------------------------------------------------------------------------
def _round_up(x, m):
    return (x + m - 1) // m * m


def _vmem_budget():
    """Returns (vmem_limit_bytes, per-step working-set budget) for this chip."""
    try:
        cap = pltpu.get_tpu_info().vmem_capacity_bytes
    except Exception:
        cap = 64 << 20                          # unknown chip: assume the smallest
    if cap <= (80 << 20):                       # v7x-class: 64 MiB physical VMEM
        return 40 << 20, 22 << 20
    return 96 << 20, 56 << 20                   # v5e / v6e: 128 MiB physical VMEM


def _step_vmem_bytes(TB, TQ, Np, F_in, F_out, itemsize):
    """Honest per-grid-step VMEM estimate: temps + pipelined blocks + scratch."""
    plane = TB * TQ * Np * 4
    temps = 6 * plane                                   # e/mask/logits/p/att/cast
    adj_blk = 2 * plane                                 # double-buffered adjacency
    out_blk = 2 * TB * TQ * F_out * max(4, itemsize)
    h_blk = TB * Np * F_in * itemsize                   # single-buffered (Buffered(1))
    wh = TB * Np * F_out * itemsize
    f1 = TB * _round_up(Np, 8) * 128 * 4                # (Np,1) lane-pads to 128
    f2 = TB * 8 * Np * 4                                # (1,Np) sublane-pads to 8
    proj = TB * Np * (F_out + 2) * 4                    # q==0 f32 matmul result
    return temps + adj_blk + out_blk + h_blk + wh + f1 + f2 + proj


def _choose_tiles(B, N, F_in, F_out, itemsize, force_tq=None):
    vmem_limit, budget = _vmem_budget()

    # Query tile / padded node count.  TQ == N (full-dim blocks, no padding) is
    # always BlockSpec-legal; otherwise tile with a multiple of 128 and pad N
    # (padded neighbours have adj == 0, so the mask already removes them).
    if force_tq is not None:
        TQ = int(force_tq)
        Np = N if TQ == N else _round_up(N, TQ)
    elif _step_vmem_bytes(1, N, N, F_in, F_out, itemsize) <= budget:
        TQ, Np = N, N
    else:
        TQ = 128
        for cand in (512, 256):
            if _step_vmem_bytes(1, cand, _round_up(N, cand), F_in, F_out,
                                itemsize) <= budget:
                TQ = cand
                break
        Np = _round_up(N, TQ)

    # Batch tile: largest divisor of B that fits the budget, capped at B // 2
    # so the "parallel" batch grid axis keeps >= 2 blocks (v7x dual TensorCore).
    TB = 1
    for tb in range(2, max(1, B // 2) + 1):
        if B % tb == 0 and _step_vmem_bytes(tb, TQ, Np, F_in, F_out,
                                            itemsize) <= budget:
            TB = tb
    return TQ, Np, TB, vmem_limit


# ----------------------------------------------------------------------------
# Wrapper.
# ----------------------------------------------------------------------------
@functools.partial(jax.jit, static_argnames=("force_tq",))
def gat_forward(h, adj, W, a, force_tq=None):
    """GAT forward (concat=True branch, eval mode). h:(B,N,F_in), adj:(B,N,N)."""
    B, N, F_in = h.shape
    F_out = W.shape[1]
    cdt = h.dtype

    # Fold the attention-vector products into the projection matmul:
    #   W_ext = [ W | W @ a[:F_out] | W @ a[F_out:] ]   (F_in, F_out + 2)
    a_pack = jnp.concatenate([a[:F_out], a[F_out:]], axis=1).astype(jnp.float32)
    w_ext = jnp.concatenate(
        [W.astype(jnp.float32), W.astype(jnp.float32) @ a_pack], axis=1
    ).astype(cdt)

    TQ, Np, TB, vmem_limit = _choose_tiles(
        B, N, F_in, F_out, jnp.dtype(cdt).itemsize, force_tq)

    # Pad nodes only when the query axis is actually tiled; adjacency is passed
    # straight through in its incoming dtype (no int8 pre-cast HBM pass).
    if Np != N:
        h = jnp.pad(h, ((0, 0), (0, Np - N), (0, 0)))
        adj = jnp.pad(adj, ((0, 0), (0, Np - N), (0, Np - N)))

    # Lane-dense output (rows of TQ*F_out lanes) whenever the flattened block
    # is BlockSpec-legal; otherwise fall back to the plain (TQ, F_out) block.
    flat_out = (TB % 8 == 0) or (TB == B)
    if flat_out:
        out_shape = jax.ShapeDtypeStruct((B, Np * F_out), cdt)
        out_spec = pl.BlockSpec((TB, TQ * F_out), lambda b, q: (b, q))
    else:
        out_shape = jax.ShapeDtypeStruct((B, Np, F_out), cdt)
        out_spec = pl.BlockSpec((TB, TQ, F_out), lambda b, q: (b, q, 0))

    out = pl.pallas_call(
        _gat_kernel,
        out_shape=out_shape,
        grid_spec=pltpu.PrefetchScalarGridSpec(
            num_scalar_prefetch=0,
            grid=(B // TB, Np // TQ),
            in_specs=[
                # h and W_ext are q-invariant: single-buffer them to save VMEM.
                pl.BlockSpec((TB, Np, F_in), lambda b, q: (b, 0, 0),
                             pipeline_mode=pl.Buffered(1)),
                pl.BlockSpec((F_in, F_out + 2), lambda b, q: (0, 0),
                             pipeline_mode=pl.Buffered(1)),
                pl.BlockSpec((TB, TQ, Np), lambda b, q: (b, q, 0)),
            ],
            out_specs=out_spec,
            scratch_shapes=[
                pltpu.VMEM((TB, Np, F_out), cdt),       # Wh, reused across q tiles
                pltpu.VMEM((TB, Np, 1), jnp.float32),   # f1 = Wh @ a[:F_out]
                pltpu.VMEM((TB, 1, Np), jnp.float32),   # f2 = (Wh @ a[F_out:])^T
            ],
        ),
        compiler_params=pltpu.CompilerParams(
            dimension_semantics=("parallel", "arbitrary"),
            vmem_limit_bytes=vmem_limit,
        ),
    )(h, w_ext, adj)

    if flat_out:
        out = out.reshape(B, Np, F_out)
    return out[:, :N, :] if Np != N else out


# ----------------------------------------------------------------------------
# Reference / demo.
# ----------------------------------------------------------------------------
def _xavier_uniform(key, shape, gain):
    fan_in, fan_out = shape[0], shape[1]
    bound = gain * jnp.sqrt(6.0 / (fan_in + fan_out))
    return jax.random.uniform(key, shape, jnp.float32, -bound, bound)


def _reference(h, adj, W, a, leaky_alpha=LEAKY_ALPHA):
    # Plain-JAX reference mirroring the PyTorch forward (eval mode).
    F_out = W.shape[1]
    Wh = jnp.einsum("bnf,fg->bng", h, W)
    f1 = jnp.einsum("bng,go->bno", Wh, a[:F_out])[..., 0]
    f2 = jnp.einsum("bng,go->bno", Wh, a[F_out:])[..., 0]
    e = f1[:, :, None] + f2[:, None, :]
    e = jnp.where(e > 0, e, leaky_alpha * e)
    logits = jnp.where(adj > 0, e, jnp.full_like(e, NEG_BIG))
    att = jax.nn.softmax(logits, axis=-1)
    h_prime = jnp.einsum("bij,bjg->big", att, Wh)
    return jnp.where(h_prime > 0, h_prime, jnp.exp(jnp.minimum(h_prime, 0.0)) - 1.0)


if __name__ == "__main__":
    key = jax.random.PRNGKey(0)
    k_h, k_adj, k_w, k_a = jax.random.split(key, 4)

    def make_inputs(B, N, F_in, F_out):
        h = jax.random.normal(k_h, (B, N, F_in), jnp.float32)
        adj = (jax.random.uniform(k_adj, (B, N, N)) > 0.5).astype(jnp.float32)
        adj = jnp.maximum(adj, jnp.eye(N, dtype=jnp.float32)[None])
        W = _xavier_uniform(k_w, (F_in, F_out), 1.414)
        a = _xavier_uniform(k_a, (2 * F_out, 1), 1.414)
        return h, adj, W, a

    # 1) Base case (f32): B=2 graphs of N=8 nodes, 16 -> 32 features.
    B, N, F_in, F_out = 2, 8, 16, 32
    h, adj, W, a = make_inputs(B, N, F_in, F_out)
    out = gat_forward(h, adj, W, a)
    jax.block_until_ready(out)
    ref = _reference(h, adj, W, a)
    assert out.shape == (B, N, F_out)
    assert jnp.allclose(out, ref, atol=1e-2, rtol=1e-2), "f32 mismatch vs reference"

    # 2) bf16 operands (fast MXU path, f32 accumulation).
    out_bf = gat_forward(h.astype(jnp.bfloat16), adj,
                         W.astype(jnp.bfloat16), a.astype(jnp.bfloat16))
    jax.block_until_ready(out_bf)
    ref_bf = _reference(h.astype(jnp.bfloat16).astype(jnp.float32), adj,
                        W.astype(jnp.bfloat16).astype(jnp.float32),
                        a.astype(jnp.bfloat16).astype(jnp.float32))
    assert jnp.allclose(out_bf.astype(jnp.float32), ref_bf, atol=0.1, rtol=0.1), \
        "bf16 mismatch vs reference"

    # 3) Larger batch: exercises TB > 1 and the lane-dense flattened output.
    h3, adj3, W3, a3 = make_inputs(16, 8, 16, 32)
    out3 = gat_forward(h3, adj3, W3, a3)
    jax.block_until_ready(out3)
    ref3 = _reference(h3, adj3, W3, a3)
    assert out3.shape == (16, 8, 32)
    assert jnp.allclose(out3, ref3, atol=1e-2, rtol=1e-2), "batched mismatch"

    # 4) Non-multiple N with a forced query tile: exercises node padding and
    #    the multi-tile query loop (scratch Wh/f1/f2 reuse across q > 0).
    h4, adj4, W4, a4 = make_inputs(2, 200, 16, 32)
    out4 = gat_forward(h4, adj4, W4, a4, force_tq=128)
    jax.block_until_ready(out4)
    ref4 = _reference(h4, adj4, W4, a4)
    assert out4.shape == (2, 200, 32)
    assert jnp.allclose(out4, ref4, atol=1e-2, rtol=1e-2), "padded/tiled mismatch"

    print("KERNEL_OK")
</pallas_src>

<mosaic_0001>
module attributes {stable_mosaic.version = 11 : i64} {
  func.func @_gat_kernel(%arg0: i32, %arg1: i32, %arg2: memref<1x8x16xf32, #tpu.memory_space<vmem>>, %arg3: memref<16x34xf32, #tpu.memory_space<vmem>>, %arg4: memref<1x8x8xf32, #tpu.memory_space<vmem>>, %arg5: memref<1x8x32xf32, #tpu.memory_space<vmem>>, %arg6: memref<1x8x32xf32, #tpu.memory_space<vmem>>, %arg7: memref<1x8x1xf32, #tpu.memory_space<vmem>>, %arg8: memref<1x1x8xf32, #tpu.memory_space<vmem>>) attributes {dimension_semantics = [#tpu.dimension_semantics<parallel>, #tpu.dimension_semantics<arbitrary>], iteration_bounds = array<i64: 2, 1>, scalar_prefetch = 0 : i64, scratch_operands = 3 : i64, tpu.core_type = #tpu.core_type<tc>, window_params = [{pipeline_mode = #tpu.pipeline_mode<synchronous>, transform_indices = @transform_0, window_bounds = array<i64: 1, 8, 16>}, {pipeline_mode = #tpu.pipeline_mode<synchronous>, transform_indices = @transform_1, window_bounds = array<i64: 16, 34>}, {transform_indices = @transform_2, window_bounds = array<i64: 1, 8, 8>}, {transform_indices = @transform_3, window_bounds = array<i64: 1, 8, 32>}]} {
    %c0_i32 = arith.constant 0 : i32
    %0 = arith.cmpi eq, %arg1, %c0_i32 : i32
    %1 = arith.extui %0 : i1 to i32
    %c0_i32_0 = arith.constant 0 : i32
    %2 = arith.cmpi ne, %1, %c0_i32_0 : i32
    scf.if %2 {
      %c0_22 = arith.constant 0 : index
      %c0_23 = arith.constant 0 : index
      %c0_24 = arith.constant 0 : index
      %40 = vector.load %arg2[%c0_22, %c0_23, %c0_24] : memref<1x8x16xf32, #tpu.memory_space<vmem>>, vector<1x8x16xf32>
      %41 = vector.shape_cast %40 : vector<1x8x16xf32> to vector<8x16xf32>
      %c0_25 = arith.constant 0 : index
      %c0_26 = arith.constant 0 : index
      %42 = vector.load %arg3[%c0_25, %c0_26] : memref<16x34xf32, #tpu.memory_space<vmem>>, vector<16x34xf32>
      %cst_27 = arith.constant dense<0.000000e+00> : vector<8x34xf32>
      %43 = tpu.matmul %41, %42, %cst_27 {dimension_numbers = #tpu.dot_dimension_numbers<[1], [0], [0], [1], [0, 0, 1, 1], [], []>} : vector<8x16xf32>, vector<16x34xf32>, vector<8x34xf32> -> vector<8x34xf32>
      %44 = vector.extract_strided_slice %43 {offsets = [0, 0], sizes = [8, 32], strides = [1, 1]} : vector<8x34xf32> to vector<8x32xf32>
      %45 = vector.shape_cast %44 : vector<8x32xf32> to vector<1x8x32xf32>
      %c0_28 = arith.constant 0 : index
      %c0_29 = arith.constant 0 : index
      %c0_30 = arith.constant 0 : index
      %46 = vector.load %arg6[%c0_28, %c0_29, %c0_30] : memref<1x8x32xf32, #tpu.memory_space<vmem>>, vector<1x8x32xf32>
      tpu.vector_store %arg6[%c0_28, %c0_29, %c0_30], %45 {strides = array<i32>} : memref<1x8x32xf32, #tpu.memory_space<vmem>>, vector<1x8x32xf32>,
      %47 = vector.extract_strided_slice %43 {offsets = [0, 32], sizes = [8, 2], strides = [1, 1]} : vector<8x34xf32> to vector<8x2xf32>
      %48 = vector.shape_cast %47 : vector<8x2xf32> to vector<1x8x2xf32>
      %49 = vector.extract_strided_slice %48 {offsets = [0, 0, 0], sizes = [1, 8, 1], strides = [1, 1, 1]} : vector<1x8x2xf32> to vector<1x8x1xf32>
      %c0_31 = arith.constant 0 : index
      %c0_32 = arith.constant 0 : index
      %c0_33 = arith.constant 0 : index
      %50 = vector.load %arg7[%c0_31, %c0_32, %c0_33] : memref<1x8x1xf32, #tpu.memory_space<vmem>>, vector<1x8x1xf32>
      tpu.vector_store %arg7[%c0_31, %c0_32, %c0_33], %49 {strides = array<i32>} : memref<1x8x1xf32, #tpu.memory_space<vmem>>, vector<1x8x1xf32>,
      %51 = vector.extract_strided_slice %48 {offsets = [0, 0, 1], sizes = [1, 8, 1], strides = [1, 1, 1]} : vector<1x8x2xf32> to vector<1x8x1xf32>
      %52 = tpu.transpose %51, [0, 2, 1] : vector<1x8x1xf32> -> vector<1x1x8xf32>
      %c0_34 = arith.constant 0 : index
      %c0_35 = arith.constant 0 : index
      %c0_36 = arith.constant 0 : index
      %53 = vector.load %arg8[%c0_34, %c0_35, %c0_36] : memref<1x1x8xf32, #tpu.memory_space<vmem>>, vector<1x1x8xf32>
      tpu.vector_store %arg8[%c0_34, %c0_35, %c0_36], %52 {strides = array<i32>} : memref<1x1x8xf32, #tpu.memory_space<vmem>>, vector<1x1x8xf32>,
    } else {
    }
    %c8_i32 = arith.constant 8 : i32
    %3 = arith.muli %arg1, %c8_i32 : i32
    %4 = tpu.assume_multiple %3, 8 : i32
    %c0 = arith.constant 0 : index
    %5 = arith.index_cast %4 : i32 to index
    %c0_1 = arith.constant 0 : index
    %6 = vector.load %arg7[%c0, %5, %c0_1] : memref<1x8x1xf32, #tpu.memory_space<vmem>>, vector<1x8x1xf32>
    %c0_2 = arith.constant 0 : index
    %c0_3 = arith.constant 0 : index
    %c0_4 = arith.constant 0 : index
    %7 = vector.load %arg8[%c0_2, %c0_3, %c0_4] : memref<1x1x8xf32, #tpu.memory_space<vmem>>, vector<1x1x8xf32>
    %8 = vector.broadcast %6 : vector<1x8x1xf32> to vector<1x8x8xf32>
    %9 = vector.broadcast %7 : vector<1x1x8xf32> to vector<1x8x8xf32>
    %10 = arith.addf %8, %9 : vector<1x8x8xf32>
    %cst = arith.constant 2.000000e-01 : f32
    %11 = vector.broadcast %cst : f32 to vector<1x8x8xf32>
    %12 = arith.mulf %11, %10 : vector<1x8x8xf32>
    %13 = arith.maximumf %10, %12 : vector<1x8x8xf32>
    %c0_5 = arith.constant 0 : index
    %c0_6 = arith.constant 0 : index
    %c0_7 = arith.constant 0 : index
    %14 = vector.load %arg4[%c0_5, %c0_6, %c0_7] : memref<1x8x8xf32, #tpu.memory_space<vmem>>, vector<1x8x8xf32>
    %cst_8 = arith.constant 0.000000e+00 : f32
    %15 = vector.broadcast %cst_8 : f32 to vector<1x8x8xf32>
    %16 = arith.cmpf ogt, %14, %15 : vector<1x8x8xf32>
    %cst_9 = arith.constant -9.000000e+15 : f32
    %17 = vector.broadcast %cst_9 : f32 to vector<1x8x8xf32>
    %18 = arith.select %16, %13, %17 : vector<1x8x8xi1>, vector<1x8x8xf32>
    %cst_10 = arith.constant dense<0xFF800000> : vector<1x8xf32>
    %19 = vector.multi_reduction <maximumf>, %18, %cst_10 [2] : vector<1x8x8xf32> to vector<1x8xf32>
    %20 = vector.shape_cast %19 : vector<1x8xf32> to vector<1x8x1xf32>
    %21 = vector.broadcast %20 : vector<1x8x1xf32> to vector<1x8x8xf32>
    %22 = arith.subf %18, %21 : vector<1x8x8xf32>
    %23 = math.exp %22 : vector<1x8x8xf32>
    %cst_11 = arith.constant dense<0.000000e+00> : vector<1x8xf32>
    %24 = vector.multi_reduction <add>, %23, %cst_11 [2] : vector<1x8x8xf32> to vector<1x8xf32>
    %25 = vector.shape_cast %24 : vector<1x8xf32> to vector<1x8x1xf32>
    %26 = tpu.reciprocal %25 {approx = true} : vector<1x8x1xf32> -> vector<1x8x1xf32>
    %27 = vector.broadcast %26 : vector<1x8x1xf32> to vector<1x8x8xf32>
    %28 = arith.mulf %23, %27 : vector<1x8x8xf32>
    %c0_12 = arith.constant 0 : index
    %c0_13 = arith.constant 0 : index
    %c0_14 = arith.constant 0 : index
    %29 = vector.load %arg6[%c0_12, %c0_13, %c0_14] : memref<1x8x32xf32, #tpu.memory_space<vmem>>, vector<1x8x32xf32>
    "tpu.trace_start"() <{level = 10 : i32, message = "bqn,bng->bqg"}> : () -> ()
    %cst_15 = arith.constant dense<0.000000e+00> : vector<1x8x32xf32>
    %30 = tpu.matmul %28, %29, %cst_15 {dimension_numbers = #tpu.dot_dimension_numbers<[2], [1], [1], [2], [0, 0, 0, 1, 1, 2], [0], [0]>} : vector<1x8x8xf32>, vector<1x8x32xf32>, vector<1x8x32xf32> -> vector<1x8x32xf32>
    %cst_16 = arith.constant 0.000000e+00 : f32
    "tpu.trace_stop"() : () -> ()
    %31 = vector.broadcast %cst_16 : f32 to vector<1x8x32xf32>
    %32 = arith.cmpf ogt, %30, %31 : vector<1x8x32xf32>
    %cst_17 = arith.constant 0.000000e+00 : f32
    %33 = vector.broadcast %cst_17 : f32 to vector<1x8x32xf32>
    %34 = arith.minimumf %30, %33 : vector<1x8x32xf32>
    %35 = math.exp %34 : vector<1x8x32xf32>
    %cst_18 = arith.constant 1.000000e+00 : f32
    %36 = vector.broadcast %cst_18 : f32 to vector<1x8x32xf32>
    %37 = arith.subf %35, %36 : vector<1x8x32xf32>
    %38 = arith.select %32, %30, %37 : vector<1x8x32xi1>, vector<1x8x32xf32>
    %c0_19 = arith.constant 0 : index
    %c0_20 = arith.constant 0 : index
    %c0_21 = arith.constant 0 : index
    %39 = vector.load %arg5[%c0_19, %c0_20, %c0_21] : memref<1x8x32xf32, #tpu.memory_space<vmem>>, vector<1x8x32xf32>
    tpu.vector_store %arg5[%c0_19, %c0_20, %c0_21], %38 {strides = array<i32>} : memref<1x8x32xf32, #tpu.memory_space<vmem>>, vector<1x8x32xf32>,
    return
  }
  func.func @transform_0(%arg0: i32, %arg1: i32) -> (i32, i32, i32) {
    %c0_i32 = arith.constant 0 : i32
    %c0_i32_0 = arith.constant 0 : i32
    %c0_i32_1 = arith.constant 0 : i32
    return %arg0, %c0_i32, %c0_i32_0 : i32, i32, i32
  }
  func.func @transform_1(%arg0: i32, %arg1: i32) -> (i32, i32) {
    %c0_i32 = arith.constant 0 : i32
    %c0_i32_0 = arith.constant 0 : i32
    %c0_i32_1 = arith.constant 0 : i32
    return %c0_i32, %c0_i32_0 : i32, i32
  }
  func.func @transform_2(%arg0: i32, %arg1: i32) -> (i32, i32, i32) {
    %c0_i32 = arith.constant 0 : i32
    %c0_i32_0 = arith.constant 0 : i32
    return %arg0, %arg1, %c0_i32 : i32, i32, i32
  }
  func.func @transform_3(%arg0: i32, %arg1: i32) -> (i32, i32, i32) {
    %c0_i32 = arith.constant 0 : i32
    %c0_i32_0 = arith.constant 0 : i32
    return %arg0, %arg1, %c0_i32 : i32, i32, i32
  }
}

</mosaic_0001>

<llo_original>
// kernel: gat_forward.1
$region0: #{gat_forward.1}
  #allocation0 [shape = 'u32[]', space=smem, size = 0x4, offset = 0x4, fixed_abs, tag = 'smem constant byte address 0x4 - core index']
  #allocation1 [shape = 'u32[144,128]{1,0:T(1,128)}', space=vmem, size = 0x12000, scoped, tag = 'internal scratch']
  #allocation2 [shape = 'f32[1,8,32]{2,1,0:T(8,128)}', space=vmem, size = 0x1000, scoped, tag = 'scratch operand']
  #allocation3 [shape = 'f32[1,8,1]{2,1,0:T(8,128)}', space=vmem, size = 0x1000, scoped, tag = 'scratch operand']
  #allocation4 [shape = 'f32[1,1,8]{2,1,0:T(1,128)}', space=vmem, size = 0x200, scoped, tag = 'scratch operand']
  %s0 = inlined_call_operand.vmem [shape: f32[2,8,16], index: 0, kind: input, shape index: {}]
  %s1 = inlined_call_operand.vmem [shape: f32[16,34], index: 1, kind: input, shape index: {}]
  %s2 = inlined_call_operand.vmem [shape: f32[2,8,8], index: 2, kind: input, shape index: {}]
  %s3 = inlined_call_operand.hbm [shape: f32[2,8,32], index: 3, kind: output, shape index: {}]
  %s4 = sld [smem:[#allocation0]]
  $region49: #{gat_forward.1} parent=0
    _
  %s6 = ssub.s32 1, %s4
  %s7 = scalar_select 0, %s6, %s4
  $region1: #{gat_forward.1} parent=0
    #allocation5 [shape = 'u8[8192]{0}', space=vmem, size = 0x2000, scoped, tag = 'output window, operand 0']
    #allocation6 [shape = 's32[2]{0}', space=sflag, size = 0x8, scoped, tag = 'scoped memory for gat_forward.1']
    %8 = vsyncpa [#allocation6], 0
    %s9 = scalar_lea.sflag [#allocation6], 1
    %10 = vsyncpa %s9, 0
    loop: start=0, step=1, limit=4
    $region2: #{gat_forward.1} parent=1 // loop_pre_header
      _
    $region3: #{gat_forward.1} parent=1 // loop_header
      %s12 = sphi 0, %s16
      %p13 = scmp.ge.s32.totalorder %s12, 4
      %s19 = sphi 0, %s31
      %s20 = sphi 0, %s27
      %s21 = sphi 0, %s19
      %s22 = sphi 0, %s20
      %s23 = sphi 0, %s21
      %s24 = sphi 0, %s22
      %s34 = sphi 0, %s36
      %s37 = sphi 0, %s34
      %s38 = sphi 0, %s37
      %s54 = sphi 0, %s38
      %s58 = sphi 0, %s58
      %s60 = sphi 0, %s58
      %s61 = sphi 0, %s60
      %s75 = sphi 0, %s61
      %s83 = sphi 0, %s85
      %s86 = sphi 0, %s83
      %s87 = sphi 0, %s86
      %s103 = sphi 0, %s87
      %s111 = sphi 0, %s113
      %s114 = sphi 0, %s111
      %s115 = sphi 0, %s114
      %s131 = sphi 0, %s115
    $region4: #{gat_forward.1} parent=1 // loop_header_branch
      %15 = sbr.rel (%p13) target = $region8
    $region5: #{gat_forward.1} parent=1 // loop_body
      %s17 = ssub.s32 %s12, 1
      %s18 = ssub.s32 %s12, 2
      %s25 = sadd.s32 1, %s20
      %p26 = scmp.ge.s32.totalorder %s25, 1
      %s27 = scalar_select %p26, 0, %s25
      %s28 = sadd.s32 1, %s19
      %s29 = scalar_select %p26, %s28, %s19
      %p30 = scmp.ge.s32.totalorder %s29, 2
      %s31 = scalar_select %p30, 0, %s29
      %s32 = ssub.s32 %s19, %s31
      %p33 = scmp.eq.s32.totalorder %s32, 0
      %s35 = sadd.s32 %s34, 1
      %s36 = scalar_select %p33, %s34, %s35
      %p39 = pneg %p33
      %p40 = scmp.eq.s32.totalorder %s12, 1
      %p41 = por %p39, %p40
      %p42 = scmp.ne.s32.totalorder %s34, %s37
      %p43 = scmp.eq.s32.totalorder %s12, 0
      %p44 = por %p42, %p43
      %p45 = scmp.ne.s32.totalorder %s34, %s37
      %p46 = scmp.eq.s32.totalorder %s17, 1
      %p47 = por %p45, %p46
      %p48 = scmp.ne.s32.totalorder %s37, %s38
      %p49 = scmp.eq.s32.totalorder %s17, 0
      %p50 = por %p48, %p49
      %p51 = scmp.ne.s32.totalorder %s37, %s38
      %p52 = scmp.eq.s32.totalorder %s18, 1
      %p53 = por %p51, %p52
      %p55 = scmp.ne.s32.totalorder %s38, %s54
      %p56 = scmp.eq.s32.totalorder %s18, 0
      %p57 = por %p55, %p56
      %s59 = sadd.s32 %s58, 1
      %p62 = scmp.eq.s32.totalorder %s12, 1
      %p63 = scmp.ne.s32.totalorder %s58, %s60
      %p64 = scmp.eq.s32.totalorder %s12, 0
      %p65 = por %p63, %p64
      %p66 = scmp.ne.s32.totalorder %s58, %s60
      %p67 = scmp.eq.s32.totalorder %s17, 1
      %p68 = por %p66, %p67
      %p69 = scmp.ne.s32.totalorder %s60, %s61
      %p70 = scmp.eq.s32.totalorder %s17, 0
      %p71 = por %p69, %p70
      %p72 = scmp.ne.s32.totalorder %s60, %s61
      %p73 = scmp.eq.s32.totalorder %s18, 1
      %p74 = por %p72, %p73
      %p76 = scmp.ne.s32.totalorder %s61, %s75
      %p77 = scmp.eq.s32.totalorder %s18, 0
      %p78 = por %p76, %p77
      %s79 = ssub.s32 %s19, %s31
      %s80 = ssub.s32 %s20, %s27
      %s81 = sor.u32 %s79, %s80
      %p82 = scmp.eq.s32.totalorder %s81, 0
      %s84 = sadd.s32 %s83, 1
      %s85 = scalar_select %p82, %s83, %s84
      %p88 = pneg %p82
      %p89 = scmp.eq.s32.totalorder %s12, 1
      %p90 = por %p88, %p89
      %p91 = scmp.ne.s32.totalorder %s83, %s86
      %p92 = scmp.eq.s32.totalorder %s12, 0
      %p93 = por %p91, %p92
      %p94 = scmp.ne.s32.totalorder %s83, %s86
      %p95 = scmp.eq.s32.totalorder %s17, 1
      %p96 = por %p94, %p95
      %p97 = scmp.ne.s32.totalorder %s86, %s87
      %p98 = scmp.eq.s32.totalorder %s17, 0
      %p99 = por %p97, %p98
      %p100 = scmp.ne.s32.totalorder %s86, %s87
      %p101 = scmp.eq.s32.totalorder %s18, 1
      %p102 = por %p100, %p101
      %p104 = scmp.ne.s32.totalorder %s87, %s103
      %p105 = scmp.eq.s32.totalorder %s18, 0
      %p106 = por %p104, %p105
      %s107 = ssub.s32 %s19, %s31
      %s108 = ssub.s32 %s20, %s27
      %s109 = sor.u32 %s107, %s108
      %p110 = scmp.eq.s32.totalorder %s109, 0
      %s112 = sadd.s32 %s111, 1
      %s113 = scalar_select %p110, %s111, %s112
      %p116 = pneg %p110
      %p117 = scmp.eq.s32.totalorder %s12, 1
      %p118 = por %p116, %p117
      %p119 = scmp.ne.s32.totalorder %s111, %s114
      %p120 = scmp.eq.s32.totalorder %s12, 0
      %p121 = por %p119, %p120
      %p122 = scmp.ne.s32.totalorder %s111, %s114
      %p123 = scmp.eq.s32.totalorder %s17, 1
      %p124 = por %p122, %p123
      %p125 = scmp.ne.s32.totalorder %s114, %s115
      %p126 = scmp.eq.s32.totalorder %s17, 0
      %p127 = por %p125, %p126
      %p128 = scmp.ne.s32.totalorder %s114, %s115
      %p129 = scmp.eq.s32.totalorder %s18, 1
      %p130 = por %p128, %p129
      %p132 = scmp.ne.s32.totalorder %s115, %s131
      %p133 = scmp.eq.s32.totalorder %s18, 0
      %p134 = por %p132, %p133
      %p135 = scmp.le.s32.totalorder 1, %s12
      %p136 = scmp.lt.s32.totalorder %s12, 3
      %p137 = pnand %p135, %p136
      %p138 = pneg %p137
      // Predicated region
      $region9: #{gat_forward.1} parent=5 // pred_check
        _
      $region10: #{gat_forward.1} parent=5 // pred_check_branch
        %140 = sbr.rel (%p137) target = $region12
      $region11: #{gat_forward.1} parent=5 // pred_region
        %s141 = ssub.s32 %s12, 1
        // Predicated region
        $region13: #{gat_forward.1} parent=11 // pred_check
          %p142 = pneg %p50
        $region14: #{gat_forward.1} parent=11 // pred_check_branch
          %144 = sbr.rel (%p142) target = $region16
        $region15: #{gat_forward.1} parent=11 // pred_region
          %p145 = scmp.lt.s32.totalorder %s21, 1
          %s146 = scalar_select %p145, %s21, 1
          %s147 = smul.addr %s146, 8
          %s148 = scalar_lea.vmem %s0, %s147
        $region16: #{gat_forward.1} parent=11 // pred_fallthru
          _
        // Predicated region
        $region17: #{gat_forward.1} parent=11 // pred_check
          %p149 = pneg %p71
        $region18: #{gat_forward.1} parent=11 // pred_check_branch
          %151 = sbr.rel (%p149) target = $region20
        $region19: #{gat_forward.1} parent=11 // pred_region
          _
        $region20: #{gat_forward.1} parent=11 // pred_fallthru
          _
      $region12: #{gat_forward.1} parent=5 // pred_fallthru
        _
      %p152 = scmp.lt.s32.totalorder %s12, 2
      // Predicated region
      $region21: #{gat_forward.1} parent=5 // pred_check
        %p153 = pneg %p152
      $region22: #{gat_forward.1} parent=5 // pred_check_branch
        %155 = sbr.rel (%p153) target = $region24
      $region23: #{gat_forward.1} parent=5 // pred_region
        // Predicated region
        $region25: #{gat_forward.1} parent=23 // pred_check
          %p156 = pneg %p93
        $region26: #{gat_forward.1} parent=23 // pred_check_branch
          %158 = sbr.rel (%p156) target = $region28
        $region27: #{gat_forward.1} parent=23 // pred_region
          %p159 = scmp.lt.s32.totalorder %s19, 1
          %s160 = scalar_select %p159, %s19, 1
          %p161 = scmp.lt.s32.totalorder %s20, 0
          %s162 = scalar_select %p161, %s20, 0
          %s163 = sadd.s32 %s162, %s160
          %s164 = smul.addr %s163, 8
          %s165 = scalar_lea.vmem %s2, %s164
        $region28: #{gat_forward.1} parent=23 // pred_fallthru
          _
      $region24: #{gat_forward.1} parent=5 // pred_fallthru
        _
      %p166 = scmp.le.s32.totalorder 1, %s12
      %p167 = scmp.lt.s32.totalorder %s12, 3
      %p168 = pnand %p166, %p167
      %p169 = pneg %p168
      // Predicated region
      $region29: #{gat_forward.1} parent=5 // pred_check
        _
      $region30: #{gat_forward.1} parent=5 // pred_check_branch
        %171 = sbr.rel (%p168) target = $region32
      $region31: #{gat_forward.1} parent=5 // pred_region
        %s172 = ssub.s32 %s12, 1
        %p173 = scmp.lt.s32.totalorder %s21, 1
        %s174 = scalar_select %p173, %s21, 1
        %s175 = smul.addr %s174, 8
        %s176 = scalar_lea.vmem %s0, %s175
        %p177 = pneg %p50
        %p178 = pneg %p47
        %p179 = pneg %p71
        %p180 = pneg %p68
        %p181 = scmp.lt.s32.totalorder %s21, 1
        %s182 = scalar_select %p181, %s21, 1
        %p183 = scmp.lt.s32.totalorder %s22, 0
        %s184 = scalar_select %p183, %s22, 0
        %s185 = sadd.s32 %s184, %s182
        %s186 = smul.addr %s185, 8
        %s187 = scalar_lea.vmem %s2, %s186
        %p188 = pneg %p99
        %p189 = pneg %p96
        %p190 = pneg %p127
        %p191 = pneg %p124
        %s192 = sand.u32 %s114, 1
        %s193 = scalar_lea.sflag [#allocation6], %s192
        %s194 = sand.u32 %s114, 1
        %s195 = smul.addr %s194, 8
        %s196 = scalar_lea.vmem [#allocation5], %s195
        %p197 = scmp.lt.s32.totalorder %s21, 1
        %s198 = scalar_select %p197, %s21, 1
        %s199 = smul.addr %s198, 8
        %s200 = scalar_lea.vmem %s0, %s199
        %p201 = scmp.lt.s32.totalorder %s21, 1
        %s202 = scalar_select %p201, %s21, 1
        %p203 = scmp.lt.s32.totalorder %s22, 0
        %s204 = scalar_select %p203, %s22, 0
        %s205 = sadd.s32 %s204, %s202
        %s206 = smul.addr %s205, 8
        %s207 = scalar_lea.vmem %s2, %s206
        %p208 = scmp.eq.s32.totalorder %s22, 0
        // Predicated region
        $region33: #{gat_forward.1} parent=31 // pred_check
          %p209 = pneg %p208
        $region34: #{gat_forward.1} parent=31 // pred_check_branch
          %211 = sbr.rel (%p209) target = $region36
        $region35: #{gat_forward.1} parent=31 // pred_region
          %v212 = vld [vmem:[%s200] sm:$0xff]
          %v213 = vld [vmem:[%s1] sm:$0xff]
          %v214 = vld [vmem:[%s1 + $0x8] sm:$0xff]
          %vm215 = vcmask 130048
          %v217 = vsel %vm215, %v212, 0
          %219 = vmatprep.subr.mxu0 0.0
          %220 = vmatpush1.msra.mxu0 %v213
          %221 = vmatprep.subr.mxu0 0.0
          %222 = vmatpush1.msra.mxu0 %v214
          %223 = vmatprep.subr.mxu0 0.0
          %224 = vmatpush1.msra.mxu0 0.0
          %225 = vmatprep.subr.mxu0 0.0
          %226 = vmatpush1.msra.mxu0 0.0
          %227 = vmatprep.subr.mxu0 0.0
          %228 = vmatpush1.msra.mxu0 0.0
          %229 = vmatprep.subr.mxu0 0.0
          %230 = vmatpush1.msra.mxu0 0.0
          %231 = vmatprep.subr.mxu0 0.0
          %232 = vmatpush1.msra.mxu0 0.0
          %233 = vmatprep.subr.mxu0 0.0
          %234 = vmatpush1.msra.mxu0 0.0
          %235 = vmatprep.subr.mxu0 0.0
          %236 = vmatpush1.msra.mxu0 0.0
          %237 = vmatprep.subr.mxu0 0.0
          %238 = vmatpush1.msra.mxu0 0.0
          %239 = vmatprep.subr.mxu0 0.0
          %240 = vmatpush1.msra.mxu0 0.0
          %241 = vmatprep.subr.mxu0 0.0
          %242 = vmatpush1.msra.mxu0 0.0
          %243 = vmatprep.subr.mxu0 0.0
          %244 = vmatpush1.msra.mxu0 0.0
          %245 = vmatprep.subr.mxu0 0.0
          %246 = vmatpush1.msra.mxu0 0.0
          %247 = vmatprep.subr.mxu0 0.0
          %248 = vmatpush1.msra.mxu0 0.0
          %249 = vmatprep.subr.mxu0 0.0
          %250 = vmatpush1.msra.mxu0 0.0
          %251 = vmatprep.subr.mxu0 0.0
          %252 = vmatpush1.msra.mxu0 0.0
          %253 = vmatprep.subr.mxu0 0.0
          %254 = vmatpush1.msra.mxu0 0.0
          %255 = vmatprep.subr.mxu0 0.0
          %256 = vmatpush1.msra.mxu0 0.0
          %257 = vmatprep.subr.mxu0 0.0
          %258 = vmatpush1.msra.mxu0 0.0
          %259 = vmatprep.subr.mxu0 0.0
          %260 = vmatpush1.msra.mxu0 0.0
          %261 = vmatprep.subr.mxu0 0.0
          %262 = vmatpush1.msra.mxu0 0.0
          %263 = vmatprep.subr.mxu0 0.0
          %264 = vmatpush1.msra.mxu0 0.0
          %265 = vmatprep.subr.mxu0 0.0
          %266 = vmatpush1.msra.mxu0 0.0
          %267 = vmatprep.subr.mxu0 0.0
          %268 = vmatpush1.msra.mxu0 0.0
          %269 = vmatprep.subr.mxu0 0.0
          %270 = vmatpush1.msra.mxu0 0.0
          %271 = vmatprep.subr.mxu0 0.0
          %272 = vmatpush1.msra.mxu0 0.0
          %273 = vmatprep.subr.mxu0 0.0
          %274 = vmatpush1.msra.mxu0 0.0
          %275 = vmatprep.subr.mxu0 0.0
          %276 = vmatpush1.msra.mxu0 0.0
          %277 = vmatprep.subr.mxu0 0.0
          %278 = vmatpush1.msra.mxu0 0.0
          %279 = vmatprep.subr.mxu0 0.0
          %280 = vmatpush1.msra.mxu0 0.0
          %281 = vmatprep.subr.mxu0 0.0
          %282 = vmatpush1.msra.mxu0 0.0
          %283 = vmatprep.mubr.f32.mxu0 0.0
          %284 = vmatmul.mubr.f32.gmra.mrb[0].mxu0 %v217
          %v285 = vpop.f32.mrb[0].mxu0
          %v286 = vadd.f32 0.0, %v285
          %v287 = vpop.f32.mrb[0].mxu0
          %288 = vdwg.mxu0
          %vm289 = vcmask 261120
          %290 = vst.msk [vmem:[#allocation2] sm:$0xff] %vm289, %v286
          %292 = vrot.lane.b32.xlu0 %v286, 96
          %v293 = vpop.permute.xlu0 %292
          %vm295 = vcmask 7168
          %296 = vst.msk [vmem:[#allocation3] sm:$0xff] %vm295, %v293
          %297 = vrot.lane.b32.xlu0 %v286, 95
          %v298 = vpop.permute.xlu0 %297
          %300 = vxpose.xlu0.b32.start [1/16] %v298, 128
          %301 = vxpose.xlu0.b32.cont [2/16] 0.0, 128
          %302 = vxpose.xlu0.b32.cont [3/16] 0.0, 128
          %303 = vxpose.xlu0.b32.cont [4/16] 0.0, 128
          %304 = vxpose.xlu0.b32.cont [5/16] 0.0, 128
          %305 = vxpose.xlu0.b32.cont [6/16] 0.0, 128
          %306 = vxpose.xlu0.b32.cont [7/16] 0.0, 128
          %307 = vxpose.xlu0.b32.cont [8/16] 0.0, 128
          %308 = vxpose.xlu0.b32.cont [9/16] 0.0, 128
          %309 = vxpose.xlu0.b32.cont [10/16] 0.0, 128
          %310 = vxpose.xlu0.b32.cont [11/16] 0.0, 128
          %311 = vxpose.xlu0.b32.cont [12/16] 0.0, 128
          %312 = vxpose.xlu0.b32.cont [13/16] 0.0, 128
          %313 = vxpose.xlu0.b32.cont [14/16] 0.0, 128
          %314 = vxpose.xlu0.b32.cont [15/16] 0.0, 128
          %315 = vxpose.xlu0.b32.end [16/16] 0.0, 128
          %v316 = vpop.trf.xlu0
          %v317 = vpop.trf.xlu0
          %v318 = vpop.trf.xlu0
          %v319 = vpop.trf.xlu0
          %v320 = vpop.trf.xlu0
          %v321 = vpop.trf.xlu0
          %v322 = vpop.trf.xlu0
          %v323 = vpop.trf.xlu0
          %v324 = vpop.trf.xlu0
          %v325 = vpop.trf.xlu0
          %v326 = vpop.trf.xlu0
          %v327 = vpop.trf.xlu0
          %v328 = vpop.trf.xlu0
          %v329 = vpop.trf.xlu0
          %v330 = vpop.trf.xlu0
          %v331 = vpop.trf.xlu0
          %vm332 = vcmask 57344
          %333 = vst.msk [vmem:[#allocation4] sm:$0x1] %vm332, %v316
        $region36: #{gat_forward.1} parent=31 // pred_fallthru
          _
        %s334 = smul.u32 %s22, 8
        %s335 = scalar_lea.vmem [#allocation3], %s334
        %v336 = vld [vmem:[%s335] sm:$0xff]
        %v337 = vld [vmem:[#allocation4] sm:$0x1]
        %339 = vset.pattern.permute.xlu0 0
        %340 = vperm.xlu0 %339, %v336
        %v341 = vpop.permute.xlu0 %340
        %v344 = vlaneseq
        %v345 = vshrl.u32 %v344, 7
        %v346 = vsub.s32 0, %v345
        %v347 = vrot.slane %v337, %v346
        %v349 = vadd.f32 %v341, %v347
        %v350 = vmul.f32 %v349, 0.2
        %v351 = vmax.f32 %v349, %v350
        %v352 = vld [vmem:[%s207] sm:$0xff]
        %vm353 = vcmp.gt.f32.partialorder %v352, 0.0
        %v354 = vsel %vm353, %v351, -9e+15
        %vm355 = vcmask 64512
        %v356 = vsel %vm355, %v354, -inf
        %357 = vmax.xlane.f32.xlu0 %v356
        %v358 = vpop.xlane.xlu0 %357
        %v359 = vsub.f32 %v354, %v358
        %v360 = vmul.f32 %v359, 1.442695
        %v361 = vpow.pop %v360
        %v362 = vsel %vm355, %v361, 0.0
        %363 = vadd.xlane.f32.xlu0 %v362
        %v364 = vpop.xlane.xlu0 %363
        %v365 = vrcp.pop %v364
        %v366 = vmul.f32 %v361, %v365
        %v367 = vld [vmem:[#allocation2] sm:$0xff]
        %v369 = vsel %vm355, %v366, 0
        %371 = vmatprep.subr.mxu0 0.0
        %372 = vmatpush1.msra.mxu0 %v367
        %373 = vmatprep.subr.mxu0 0.0
        %374 = vmatpush1.msra.mxu0 0.0
        %375 = vmatprep.subr.mxu0 0.0
        %376 = vmatpush1.msra.mxu0 0.0
        %377 = vmatprep.subr.mxu0 0.0
        %378 = vmatpush1.msra.mxu0 0.0
        %379 = vmatprep.subr.mxu0 0.0
        %380 = vmatpush1.msra.mxu0 0.0
        %381 = vmatprep.subr.mxu0 0.0
        %382 = vmatpush1.msra.mxu0 0.0
        %383 = vmatprep.subr.mxu0 0.0
        %384 = vmatpush1.msra.mxu0 0.0
        %385 = vmatprep.subr.mxu0 0.0
        %386 = vmatpush1.msra.mxu0 0.0
        %387 = vmatprep.subr.mxu0 0.0
        %388 = vmatpush1.msra.mxu0 0.0
        %389 = vmatprep.subr.mxu0 0.0
        %390 = vmatpush1.msra.mxu0 0.0
        %391 = vmatprep.subr.mxu0 0.0
        %392 = vmatpush1.msra.mxu0 0.0
        %393 = vmatprep.subr.mxu0 0.0
        %394 = vmatpush1.msra.mxu0 0.0
        %395 = vmatprep.subr.mxu0 0.0
        %396 = vmatpush1.msra.mxu0 0.0
        %397 = vmatprep.subr.mxu0 0.0
        %398 = vmatpush1.msra.mxu0 0.0
        %399 = vmatprep.subr.mxu0 0.0
        %400 = vmatpush1.msra.mxu0 0.0
        %401 = vmatprep.subr.mxu0 0.0
        %402 = vmatpush1.msra.mxu0 0.0
        %403 = vmatprep.subr.mxu0 0.0
        %404 = vmatpush1.msra.mxu0 0.0
        %405 = vmatprep.subr.mxu0 0.0
        %406 = vmatpush1.msra.mxu0 0.0
        %407 = vmatprep.subr.mxu0 0.0
        %408 = vmatpush1.msra.mxu0 0.0
        %409 = vmatprep.subr.mxu0 0.0
        %410 = vmatpush1.msra.mxu0 0.0
        %411 = vmatprep.subr.mxu0 0.0
        %412 = vmatpush1.msra.mxu0 0.0
        %413 = vmatprep.subr.mxu0 0.0
        %414 = vmatpush1.msra.mxu0 0.0
        %415 = vmatprep.subr.mxu0 0.0
        %416 = vmatpush1.msra.mxu0 0.0
        %417 = vmatprep.subr.mxu0 0.0
        %418 = vmatpush1.msra.mxu0 0.0
        %419 = vmatprep.subr.mxu0 0.0
        %420 = vmatpush1.msra.mxu0 0.0
        %421 = vmatprep.subr.mxu0 0.0
        %422 = vmatpush1.msra.mxu0 0.0
        %423 = vmatprep.subr.mxu0 0.0
        %424 = vmatpush1.msra.mxu0 0.0
        %425 = vmatprep.subr.mxu0 0.0
        %426 = vmatpush1.msra.mxu0 0.0
        %427 = vmatprep.subr.mxu0 0.0
        %428 = vmatpush1.msra.mxu0 0.0
        %429 = vmatprep.subr.mxu0 0.0
        %430 = vmatpush1.msra.mxu0 0.0
        %431 = vmatprep.subr.mxu0 0.0
        %432 = vmatpush1.msra.mxu0 0.0
        %433 = vmatprep.subr.mxu0 0.0
        %434 = vmatpush1.msra.mxu0 0.0
        %435 = vmatprep.mubr.f32.mxu0 0.0
        %436 = vmatmul.mubr.f32.gmra.mrb[0].mxu0 %v369
        %v437 = vpop.f32.mrb[0].mxu0
        %v438 = vadd.f32 0.0, %v437
        %v439 = vpop.f32.mrb[0].mxu0
        %440 = vdwg.mxu0
        %vm441 = vcmp.gt.f32.partialorder %v438, 0.0
        %v442 = vmin.f32 %v438, 0.0
        %v443 = vmul.f32 %v442, 1.442695
        %v444 = vpow.pop %v443
        %v445 = vsub.f32 %v444, 1.0
        %v446 = vsel %vm441, %v438, %v445
        %vm447 = vcmask 261120
        %448 = vst.msk [vmem:[%s196] sm:$0xff] %vm447, %v446
        %s449 = sand.u32 %s114, 1
        %s450 = scalar_lea.sflag [#allocation6], %s449
        %s451 = sand.u32 %s114, 1
        %s452 = smul.addr %s451, 8
        %s453 = scalar_lea.vmem [#allocation5], %s452
        // Predicated region
        $region37: #{gat_forward.1} parent=31 // pred_check
          %p454 = pneg %p124
        $region38: #{gat_forward.1} parent=31 // pred_check_branch
          %456 = sbr.rel (%p454) target = $region40
        $region39: #{gat_forward.1} parent=31 // pred_region
          %s458 = ssub.s32 128, 128
          %459 = vsyncadd %s450, %s458
          %s460 = sadd.s32 %s22, %s21
          %s461 = smul.addr %s460, 128
          %s462 = scalar_lea.hbm %s3, %s461
          %s464 = sshll.u32 %s453, 4
          %s465 = int_to_ptr.vmem [resolvable:$true] %s464
          %467 = dma.vmem_to_hbm [thread:$0]  %s465, 128, %s462, %s450
        $region40: #{gat_forward.1} parent=31 // pred_fallthru
          _
      $region32: #{gat_forward.1} parent=5 // pred_fallthru
        _
      %p468 = scmp.le.s32.totalorder 2, %s12
      // Predicated region
      $region41: #{gat_forward.1} parent=5 // pred_check
        %p469 = pneg %p468
      $region42: #{gat_forward.1} parent=5 // pred_check_branch
        %471 = sbr.rel (%p469) target = $region44
      $region43: #{gat_forward.1} parent=5 // pred_region
        %s472 = ssub.s32 %s12, 2
        // Predicated region
        $region45: #{gat_forward.1} parent=43 // pred_check
          %p473 = pneg %p130
        $region46: #{gat_forward.1} parent=43 // pred_check_branch
          %475 = sbr.rel (%p473) target = $region48
        $region47: #{gat_forward.1} parent=43 // pred_region
          %s476 = sand.u32 %s115, 1
          %s477 = scalar_lea.sflag [#allocation6], %s476
          %s478 = sand.u32 %s115, 1
          %s479 = smul.addr %s478, 8
          %s480 = scalar_lea.vmem [#allocation5], %s479
          %481 = dma.done %s477, 128
        $region48: #{gat_forward.1} parent=43 // pred_fallthru
          _
      $region44: #{gat_forward.1} parent=5 // pred_fallthru
        _
    $region6: #{gat_forward.1} parent=1 // loop_footer
      %s16 = sadd.s32 1, %s12
    $region7: #{gat_forward.1} parent=1 // loop_footer_branch
      %11 = sbr.rel target = $region3
    $region8: #{gat_forward.1} parent=1 // loop_exit
      _
    %482 = vsyncpa [#allocation6], 1
    %s483 = scalar_lea.sflag [#allocation6], 1
    %484 = vsyncpa %s483, 1

</llo_original>
